<compile_context>
chip_gen: v6e
topology: v6e:2x2x1
jax: 0.10.0
libtpu: 0.0.40
codegen_flags: <defaults>
</compile_context>

<pallas_src>
import functools

import jax
import jax.numpy as jnp
from jax.experimental import pallas as pl
from jax.experimental.pallas import tpu as pltpu

LANE = 128   # lane width
SUB = 8      # sublane rows per vreg


def _select_config():
    """Per-generation tiling: (block_rows, n_row_splits, vmem_limit_bytes).

    v7x is identified by its 64 MiB per-TC VMEM (v5e/v6e have 128 MiB); it
    gets 8192-row tiles (4 MiB/input, 16 MiB double-buffered) and a 2-way row
    split so both TensorCores stream half the data.  v5e/v6e get 4096-row
    tiles (8 MiB double-buffered) and no split.
    """
    block_rows = 4096
    n_splits = 1
    try:
        info = pltpu.get_tpu_info()
        vmem_bytes = getattr(info, "vmem_capacity_bytes", None)
        if vmem_bytes is not None and vmem_bytes <= (64 << 20):
            block_rows = 8192   # v7x: 3.2 TB/s HBM, 2 TCs, 64 MiB VMEM/TC
            n_splits = 2
    except Exception:
        pass  # conservative defaults above work on every generation
    # Explicit scoped-VMEM budget: 2 inputs x 2 buffers x tile bytes, plus the
    # three (8,128) f32 outputs and compiler scratch, with generous headroom.
    vmem_limit = 2 * 2 * block_rows * LANE * 4 + (16 << 20)
    return block_rows, n_splits, vmem_limit


def _tversky_sums_kernel(x_ref, t_ref, pt_ref, sp_ref, st_ref, *,
                         rows_total, block_rows, masked):
    """Accumulate per-lane partial sums of p*t, p and t for this row split."""
    s = pl.program_id(0)                # parallel split (core) index
    b = pl.program_id(1)                # sequential block index within split
    blk = s * pl.num_programs(1) + b    # logical (unclamped) block index

    @pl.when(b == 0)
    def _init():
        pt_ref[...] = jnp.zeros_like(pt_ref)
        sp_ref[...] = jnp.zeros_like(sp_ref)
        st_ref[...] = jnp.zeros_like(st_ref)

    x = x_ref[...].astype(jnp.float32)
    t = t_ref[...].astype(jnp.float32)

    # Single-EUP sigmoid: sigmoid(x) == 0.5*tanh(0.5*x) + 0.5 (one tanh pass
    # instead of exp + reciprocal), keeping the kernel HBM-bound on v7x.
    p = 0.5 * jnp.tanh(0.5 * x) + 0.5

    def _fold(v):
        # (block_rows, LANE) -> (8, LANE): reduce only over the leading
        # (whole-vreg) axis => plain VPU adds, no cross-lane XLU work.
        return v.reshape(-1, SUB, LANE).sum(axis=0)

    def _accumulate(pv, tv):
        pt_ref[...] += _fold(pv * tv)   # partials of TP  = Σ p·t
        sp_ref[...] += _fold(pv)        # partials of Σ p
        st_ref[...] += _fold(tv)        # partials of Σ t

    if masked:
        # Rows >= valid_rows belong to a partial or duplicated edge block;
        # they must be zeroed (stale VMEM / re-read clamped tile).  Gate the
        # mask so only edge blocks pay the extra iota/compare/select VALU
        # work; interior blocks take the cheap path.
        valid_rows = rows_total - blk * block_rows
        is_edge = valid_rows < block_rows

        @pl.when(jnp.logical_not(is_edge))
        def _interior():
            _accumulate(p, t)

        @pl.when(is_edge)
        def _edge():
            row_id = jax.lax.broadcasted_iota(jnp.int32, x.shape, 0)
            keep = row_id < valid_rows          # all-False when valid_rows<=0
            _accumulate(jnp.where(keep, p, 0.0), jnp.where(keep, t, 0.0))
    else:
        _accumulate(p, t)


def tversky_loss(inputs, targets, *, alpha, beta, smooth=1.0,
                 block_rows=None):
    """Pallas implementation of TverskyLoss.forward.

    Note: replicates the module's __init__ bug (self.alpha = beta), so the
    coefficient actually used for both FP and FN is `beta`; `alpha` is
    accepted but ignored, exactly like the PyTorch module.
    """
    del alpha  # overwritten by beta in the original module's __init__
    eff_alpha = jnp.float32(beta)
    smooth = jnp.float32(smooth)

    cfg_rows, cfg_splits, vmem_limit = _select_config()
    if block_rows is None:
        block_rows = cfg_rows

    x = inputs.reshape(-1)
    t = targets.reshape(-1)
    n = x.shape[0]

    rows = n // LANE
    tail = n - rows * LANE

    tp = jnp.float32(0.0)
    sp = jnp.float32(0.0)
    st = jnp.float32(0.0)

    if rows > 0:
        # Common case (n % 128 == 0): pure reshape, no extra HBM traffic.
        x2 = x[: rows * LANE].reshape(rows, LANE)
        t2 = t[: rows * LANE].reshape(rows, LANE)

        br = min(block_rows, ((rows + SUB - 1) // SUB) * SUB)
        nblocks = -(-rows // br)
        ns = cfg_splits if nblocks >= 2 else 1   # row split only on 2-TC v7x
        nb = -(-nblocks // ns)
        masked = (nblocks * br != rows) or (ns * nb != nblocks)

        def in_map(s, b):
            # Clamp so the duplicated trailing block (when nblocks is odd and
            # ns == 2) re-reads valid data; its contribution is masked to 0.
            return (jnp.minimum(s * nb + b, nblocks - 1), 0)

        out_map = lambda s, b: (s, 0, 0)
        out_sds = jax.ShapeDtypeStruct((ns, SUB, LANE), jnp.float32)
        out_spec = pl.BlockSpec((None, SUB, LANE), out_map)

        kernel = functools.partial(_tversky_sums_kernel, rows_total=rows,
                                   block_rows=br, masked=masked)

        pt_part, sp_part, st_part = pl.pallas_call(
            kernel,
            out_shape=(out_sds, out_sds, out_sds),
            grid_spec=pltpu.PrefetchScalarGridSpec(
                num_scalar_prefetch=0,
                grid=(ns, nb),
                in_specs=[
                    pl.BlockSpec((br, LANE), in_map),
                    pl.BlockSpec((br, LANE), in_map),
                ],
                out_specs=[out_spec, out_spec, out_spec],
            ),
            compiler_params=pltpu.CompilerParams(
                dimension_semantics=("parallel", "arbitrary"),
                vmem_limit_bytes=vmem_limit),
        )(x2, t2)

        tp = jnp.sum(pt_part)
        sp = jnp.sum(sp_part)
        st = jnp.sum(st_part)

    if tail > 0:
        # TODO(synk): flat sizes not divisible by 128 send the (<128-element)
        # remainder through plain JAX; the bulk still goes through the kernel.
        xt = x[rows * LANE:].astype(jnp.float32)
        tt = t[rows * LANE:].astype(jnp.float32)
        ptl = jax.nn.sigmoid(xt)
        tp = tp + jnp.sum(ptl * tt)
        sp = sp + jnp.sum(ptl)
        st = st + jnp.sum(tt)

    fp = sp - tp                        # Σ((1 - t) * p)
    fn = st - tp                        # Σ(t * (1 - p))
    tversky = (tp + smooth) / (tp + eff_alpha * fp + eff_alpha * fn + smooth)
    return jnp.float32(1.0) - tversky


def tversky_loss_ref(inputs, targets, *, alpha, beta, smooth=1.0):
    """Pure-JAX reference matching the PyTorch module exactly."""
    eff_alpha = beta  # module bug: self.alpha overwritten by beta
    p = jax.nn.sigmoid(inputs.astype(jnp.float32)).reshape(-1)
    t = targets.astype(jnp.float32).reshape(-1)
    TP = jnp.sum(p * t)
    FP = jnp.sum((1.0 - t) * p)
    FN = jnp.sum(t * (1.0 - p))
    tversky = (TP + smooth) / (TP + eff_alpha * FP + eff_alpha * FN + smooth)
    return 1.0 - tversky


if __name__ == "__main__":
    key = jax.random.PRNGKey(0)
    k1, k2 = jax.random.split(key)

    # NCHW, small shapes: batch=2, channels=4, spatial=16x16
    x = jax.random.normal(k1, (2, 4, 16, 16), dtype=jnp.float32)        # logits
    tgt = (jax.random.uniform(k2, (2, 4, 16, 16)) > 0.5).astype(jnp.float32)

    alpha, beta, smooth = 0.3, 0.7, 1.0

    loss = tversky_loss(x, tgt, alpha=alpha, beta=beta, smooth=smooth)
    loss = jax.block_until_ready(loss)

    ref = tversky_loss_ref(x, tgt, alpha=alpha, beta=beta, smooth=smooth)
    assert jnp.allclose(loss, ref, atol=1e-5, rtol=1e-5), (loss, ref)

    print("KERNEL_OK")
</pallas_src>

<mosaic_0001>
module attributes {stable_mosaic.version = 11 : i64} {
  func.func @_tversky_sums_kernel(%arg0: i32, %arg1: i32, %arg2: memref<16x128xf32, #tpu.memory_space<vmem>>, %arg3: memref<16x128xf32, #tpu.memory_space<vmem>>, %arg4: memref<1x8x128xf32, #tpu.memory_space<vmem>>, %arg5: memref<1x8x128xf32, #tpu.memory_space<vmem>>, %arg6: memref<1x8x128xf32, #tpu.memory_space<vmem>>) attributes {dimension_semantics = [#tpu.dimension_semantics<parallel>, #tpu.dimension_semantics<arbitrary>], iteration_bounds = array<i64: 1, 1>, scalar_prefetch = 0 : i64, scratch_operands = 0 : i64, tpu.core_type = #tpu.core_type<tc>, window_params = [{transform_indices = @transform_0, window_bounds = array<i64: 16, 128>}, {transform_indices = @transform_1, window_bounds = array<i64: 16, 128>}, {transform_indices = @transform_2, window_bounds = array<i64: 1, 8, 128>}, {transform_indices = @transform_3, window_bounds = array<i64: 1, 8, 128>}, {transform_indices = @transform_4, window_bounds = array<i64: 1, 8, 128>}]} {
    %c0_i32 = arith.constant 0 : i32
    %0 = arith.cmpi eq, %arg1, %c0_i32 : i32
    %1 = arith.extui %0 : i1 to i32
    %c0_i32_0 = arith.constant 0 : i32
    %2 = arith.cmpi ne, %1, %c0_i32_0 : i32
    scf.if %2 {
      %cst_27 = arith.constant 0.000000e+00 : f32
      %37 = vector.broadcast %cst_27 : f32 to vector<8x128xf32>
      %c0_28 = arith.constant 0 : index
      %c0_29 = arith.constant 0 : index
      %c0_30 = arith.constant 0 : index
      %38 = vector.load %arg4[%c0_28, %c0_29, %c0_30] : memref<1x8x128xf32, #tpu.memory_space<vmem>>, vector<1x8x128xf32>
      %39 = vector.shape_cast %38 : vector<1x8x128xf32> to vector<8x128xf32>
      %40 = vector.shape_cast %37 : vector<8x128xf32> to vector<1x8x128xf32>
      tpu.vector_store %arg4[%c0_28, %c0_29, %c0_30], %40 {strides = array<i32>} : memref<1x8x128xf32, #tpu.memory_space<vmem>>, vector<1x8x128xf32>,
      %cst_31 = arith.constant 0.000000e+00 : f32
      %41 = vector.broadcast %cst_31 : f32 to vector<8x128xf32>
      %c0_32 = arith.constant 0 : index
      %c0_33 = arith.constant 0 : index
      %c0_34 = arith.constant 0 : index
      %42 = vector.load %arg5[%c0_32, %c0_33, %c0_34] : memref<1x8x128xf32, #tpu.memory_space<vmem>>, vector<1x8x128xf32>
      %43 = vector.shape_cast %42 : vector<1x8x128xf32> to vector<8x128xf32>
      %44 = vector.shape_cast %41 : vector<8x128xf32> to vector<1x8x128xf32>
      tpu.vector_store %arg5[%c0_32, %c0_33, %c0_34], %44 {strides = array<i32>} : memref<1x8x128xf32, #tpu.memory_space<vmem>>, vector<1x8x128xf32>,
      %cst_35 = arith.constant 0.000000e+00 : f32
      %45 = vector.broadcast %cst_35 : f32 to vector<8x128xf32>
      %c0_36 = arith.constant 0 : index
      %c0_37 = arith.constant 0 : index
      %c0_38 = arith.constant 0 : index
      %46 = vector.load %arg6[%c0_36, %c0_37, %c0_38] : memref<1x8x128xf32, #tpu.memory_space<vmem>>, vector<1x8x128xf32>
      %47 = vector.shape_cast %46 : vector<1x8x128xf32> to vector<8x128xf32>
      %48 = vector.shape_cast %45 : vector<8x128xf32> to vector<1x8x128xf32>
      tpu.vector_store %arg6[%c0_36, %c0_37, %c0_38], %48 {strides = array<i32>} : memref<1x8x128xf32, #tpu.memory_space<vmem>>, vector<1x8x128xf32>,
    } else {
    }
    %c0 = arith.constant 0 : index
    %c0_1 = arith.constant 0 : index
    %3 = vector.load %arg2[%c0, %c0_1] : memref<16x128xf32, #tpu.memory_space<vmem>>, vector<16x128xf32>
    %c0_2 = arith.constant 0 : index
    %c0_3 = arith.constant 0 : index
    %4 = vector.load %arg3[%c0_2, %c0_3] : memref<16x128xf32, #tpu.memory_space<vmem>>, vector<16x128xf32>
    %cst = arith.constant 5.000000e-01 : f32
    %5 = vector.broadcast %cst : f32 to vector<16x128xf32>
    %6 = arith.mulf %5, %3 : vector<16x128xf32>
    %7 = math.tanh %6 : vector<16x128xf32>
    %cst_4 = arith.constant 5.000000e-01 : f32
    %8 = vector.broadcast %cst_4 : f32 to vector<16x128xf32>
    %9 = arith.mulf %8, %7 : vector<16x128xf32>
    %cst_5 = arith.constant 5.000000e-01 : f32
    %10 = vector.broadcast %cst_5 : f32 to vector<16x128xf32>
    %11 = arith.addf %9, %10 : vector<16x128xf32>
    %c0_6 = arith.constant 0 : index
    %c0_7 = arith.constant 0 : index
    %c0_8 = arith.constant 0 : index
    %12 = vector.load %arg4[%c0_6, %c0_7, %c0_8] : memref<1x8x128xf32, #tpu.memory_space<vmem>>, vector<1x8x128xf32>
    %13 = vector.shape_cast %12 : vector<1x8x128xf32> to vector<8x128xf32>
    %14 = arith.mulf %11, %4 : vector<16x128xf32>
    %15 = vector.shape_cast %14 : vector<16x128xf32> to vector<2x8x128xf32>
    %cst_9 = arith.constant dense<0.000000e+00> : vector<8x128xf32>
    %16 = vector.multi_reduction <add>, %15, %cst_9 [0] : vector<2x8x128xf32> to vector<8x128xf32>
    %17 = arith.addf %13, %16 : vector<8x128xf32>
    %c0_10 = arith.constant 0 : index
    %c0_11 = arith.constant 0 : index
    %c0_12 = arith.constant 0 : index
    %18 = vector.load %arg4[%c0_10, %c0_11, %c0_12] : memref<1x8x128xf32, #tpu.memory_space<vmem>>, vector<1x8x128xf32>
    %19 = vector.shape_cast %18 : vector<1x8x128xf32> to vector<8x128xf32>
    %20 = vector.shape_cast %17 : vector<8x128xf32> to vector<1x8x128xf32>
    tpu.vector_store %arg4[%c0_10, %c0_11, %c0_12], %20 {strides = array<i32>} : memref<1x8x128xf32, #tpu.memory_space<vmem>>, vector<1x8x128xf32>,
    %c0_13 = arith.constant 0 : index
    %c0_14 = arith.constant 0 : index
    %c0_15 = arith.constant 0 : index
    %21 = vector.load %arg5[%c0_13, %c0_14, %c0_15] : memref<1x8x128xf32, #tpu.memory_space<vmem>>, vector<1x8x128xf32>
    %22 = vector.shape_cast %21 : vector<1x8x128xf32> to vector<8x128xf32>
    %23 = vector.shape_cast %11 : vector<16x128xf32> to vector<2x8x128xf32>
    %cst_16 = arith.constant dense<0.000000e+00> : vector<8x128xf32>
    %24 = vector.multi_reduction <add>, %23, %cst_16 [0] : vector<2x8x128xf32> to vector<8x128xf32>
    %25 = arith.addf %22, %24 : vector<8x128xf32>
    %c0_17 = arith.constant 0 : index
    %c0_18 = arith.constant 0 : index
    %c0_19 = arith.constant 0 : index
    %26 = vector.load %arg5[%c0_17, %c0_18, %c0_19] : memref<1x8x128xf32, #tpu.memory_space<vmem>>, vector<1x8x128xf32>
    %27 = vector.shape_cast %26 : vector<1x8x128xf32> to vector<8x128xf32>
    %28 = vector.shape_cast %25 : vector<8x128xf32> to vector<1x8x128xf32>
    tpu.vector_store %arg5[%c0_17, %c0_18, %c0_19], %28 {strides = array<i32>} : memref<1x8x128xf32, #tpu.memory_space<vmem>>, vector<1x8x128xf32>,
    %c0_20 = arith.constant 0 : index
    %c0_21 = arith.constant 0 : index
    %c0_22 = arith.constant 0 : index
    %29 = vector.load %arg6[%c0_20, %c0_21, %c0_22] : memref<1x8x128xf32, #tpu.memory_space<vmem>>, vector<1x8x128xf32>
    %30 = vector.shape_cast %29 : vector<1x8x128xf32> to vector<8x128xf32>
    %31 = vector.shape_cast %4 : vector<16x128xf32> to vector<2x8x128xf32>
    %cst_23 = arith.constant dense<0.000000e+00> : vector<8x128xf32>
    %32 = vector.multi_reduction <add>, %31, %cst_23 [0] : vector<2x8x128xf32> to vector<8x128xf32>
    %33 = arith.addf %30, %32 : vector<8x128xf32>
    %c0_24 = arith.constant 0 : index
    %c0_25 = arith.constant 0 : index
    %c0_26 = arith.constant 0 : index
    %34 = vector.load %arg6[%c0_24, %c0_25, %c0_26] : memref<1x8x128xf32, #tpu.memory_space<vmem>>, vector<1x8x128xf32>
    %35 = vector.shape_cast %34 : vector<1x8x128xf32> to vector<8x128xf32>
    %36 = vector.shape_cast %33 : vector<8x128xf32> to vector<1x8x128xf32>
    tpu.vector_store %arg6[%c0_24, %c0_25, %c0_26], %36 {strides = array<i32>} : memref<1x8x128xf32, #tpu.memory_space<vmem>>, vector<1x8x128xf32>,
    return
  }
  func.func @transform_0(%arg0: i32, %arg1: i32) -> (i32, i32) {
    %c1_i32 = arith.constant 1 : i32
    %0 = arith.muli %arg0, %c1_i32 : i32
    %1 = arith.addi %0, %arg1 : i32
    %c0_i32 = arith.constant 0 : i32
    %2 = arith.minsi %1, %c0_i32 : i32
    %c0_i32_0 = arith.constant 0 : i32
    %c0_i32_1 = arith.constant 0 : i32
    return %2, %c0_i32_0 : i32, i32
  }
  func.func @transform_1(%arg0: i32, %arg1: i32) -> (i32, i32) {
    %c1_i32 = arith.constant 1 : i32
    %0 = arith.muli %arg0, %c1_i32 : i32
    %1 = arith.addi %0, %arg1 : i32
    %c0_i32 = arith.constant 0 : i32
    %2 = arith.minsi %1, %c0_i32 : i32
    %c0_i32_0 = arith.constant 0 : i32
    %c0_i32_1 = arith.constant 0 : i32
    return %2, %c0_i32_0 : i32, i32
  }
  func.func @transform_2(%arg0: i32, %arg1: i32) -> (i32, i32, i32) {
    %c0_i32 = arith.constant 0 : i32
    %c0_i32_0 = arith.constant 0 : i32
    %c0_i32_1 = arith.constant 0 : i32
    return %arg0, %c0_i32, %c0_i32_0 : i32, i32, i32
  }
  func.func @transform_3(%arg0: i32, %arg1: i32) -> (i32, i32, i32) {
    %c0_i32 = arith.constant 0 : i32
    %c0_i32_0 = arith.constant 0 : i32
    %c0_i32_1 = arith.constant 0 : i32
    return %arg0, %c0_i32, %c0_i32_0 : i32, i32, i32
  }
  func.func @transform_4(%arg0: i32, %arg1: i32) -> (i32, i32, i32) {
    %c0_i32 = arith.constant 0 : i32
    %c0_i32_0 = arith.constant 0 : i32
    %c0_i32_1 = arith.constant 0 : i32
    return %arg0, %c0_i32, %c0_i32_0 : i32, i32, i32
  }
}

</mosaic_0001>

<llo_original>
// kernel: tpu_custom_call.1
$region0: #{tpu_custom_call.1}
  #allocation0 [shape = 'u32[]', space=smem, size = 0x4, offset = 0x4, fixed_abs, tag = 'smem constant byte address 0x4 - core index']
  #allocation1 [shape = 'u32[144,128]{1,0:T(1,128)}', space=vmem, size = 0x12000, scoped, tag = 'internal scratch']
  %s0 = inlined_call_operand.hbm [shape: f32[16,128], index: 0, kind: input, shape index: {}]
  %s1 = inlined_call_operand.hbm [shape: f32[16,128], index: 1, kind: input, shape index: {}]
  %s2 = inlined_call_operand.hbm [shape: f32[1,8,128], index: 2, kind: output, shape index: {0}]
  %s3 = inlined_call_operand.hbm [shape: f32[1,8,128], index: 3, kind: output, shape index: {1}]
  %s4 = inlined_call_operand.hbm [shape: f32[1,8,128], index: 4, kind: output, shape index: {2}]
  %5 = xla_tuple %s2, %s3, %s4
  %s6 = sld [smem:[#allocation0]]
  $region46: #{tpu_custom_call.1} parent=0
    _
  %s8 = ssub.s32 1, %s6
  %s9 = scalar_select 0, %s8, %s6
  $region1: #{tpu_custom_call.1} parent=0
    #allocation2 [shape = 'u8[8192]{0}', space=vmem, size = 0x2000, scoped, tag = 'input window, operand 0, single buffered']
    #allocation3 [shape = 's32[1]{0}', space=sflag, size = 0x4, scoped, tag = 'scoped memory for tpu_custom_call.1']
    #allocation4 [shape = 's32[1]{0}', space=sflag, size = 0x4, scoped, tag = 'scoped memory for tpu_custom_call.1']
    #allocation5 [shape = 'u8[8192]{0}', space=vmem, size = 0x2000, scoped, tag = 'input window, operand 1, single buffered']
    #allocation6 [shape = 's32[1]{0}', space=sflag, size = 0x4, scoped, tag = 'scoped memory for tpu_custom_call.1']
    #allocation7 [shape = 'u8[4096]{0}', space=vmem, size = 0x1000, scoped, tag = 'output window, operand 0, single buffered']
    #allocation8 [shape = 'u8[4096]{0}', space=vmem, size = 0x1000, scoped, tag = 'output window, operand 1, single buffered']
    #allocation9 [shape = 's32[1]{0}', space=sflag, size = 0x4, scoped, tag = 'scoped memory for tpu_custom_call.1']
    #allocation10 [shape = 'u8[4096]{0}', space=vmem, size = 0x1000, scoped, tag = 'output window, operand 2, single buffered']
    %10 = vsyncpa [#allocation3], 0
    %11 = vsyncpa [#allocation6], 0
    %12 = vsyncpa [#allocation4], 0
    %13 = vsyncpa [#allocation9], 0
    // Predicated region
    $region2: #{tpu_custom_call.1} parent=1 // pred_check
      _
    $region3: #{tpu_custom_call.1} parent=1 // pred_check_branch
      %15 = sbr.rel (0) target = $region5
    $region4: #{tpu_custom_call.1} parent=1 // pred_region
      %s16 = sadd.s32 0, 0
      %p17 = scmp.lt.s32.totalorder %s16, 0
      %s18 = scalar_select %p17, %s16, 0
      %s19 = smul.u32 2, %s18
      %s21 = ssub.s32 256, 256
      %22 = vsyncadd [#allocation3], %s21
      %s23 = smul.addr %s19, 128
      %s24 = scalar_lea.hbm %s0, %s23
      %s25 = sshll.u32 [#allocation2], 4
      %s26 = int_to_ptr.vmem [resolvable:$true] %s25
      %31 = dma.hbm_to_vmem [thread:$0]  %s24, 256, %s26, [#allocation3], 128, 128, 8
    $region5: #{tpu_custom_call.1} parent=1 // pred_fallthru
      _
    // Predicated region
    $region6: #{tpu_custom_call.1} parent=1 // pred_check
      _
    $region7: #{tpu_custom_call.1} parent=1 // pred_check_branch
      %33 = sbr.rel (0) target = $region9
    $region8: #{tpu_custom_call.1} parent=1 // pred_region
      %s34 = sadd.s32 0, 0
      %p35 = scmp.lt.s32.totalorder %s34, 0
      %s36 = scalar_select %p35, %s34, 0
      %s37 = smul.u32 2, %s36
      %s39 = ssub.s32 256, 256
      %40 = vsyncadd [#allocation6], %s39
      %s41 = smul.addr %s37, 128
      %s42 = scalar_lea.hbm %s1, %s41
      %s43 = sshll.u32 [#allocation5], 4
      %s44 = int_to_ptr.vmem [resolvable:$true] %s43
      %49 = dma.hbm_to_vmem [thread:$0]  %s42, 256, %s44, [#allocation6], 128, 128, 8
    $region9: #{tpu_custom_call.1} parent=1 // pred_fallthru
      _
    // Predicated region
    $region10: #{tpu_custom_call.1} parent=1 // pred_check
      _
    $region11: #{tpu_custom_call.1} parent=1 // pred_check_branch
      %51 = sbr.rel (0) target = $region13
    $region12: #{tpu_custom_call.1} parent=1 // pred_region
      %52 = dma.done [#allocation3], 256
    $region13: #{tpu_custom_call.1} parent=1 // pred_fallthru
      _
    // Predicated region
    $region14: #{tpu_custom_call.1} parent=1 // pred_check
      _
    $region15: #{tpu_custom_call.1} parent=1 // pred_check_branch
      %54 = sbr.rel (0) target = $region17
    $region16: #{tpu_custom_call.1} parent=1 // pred_region
      %55 = dma.done [#allocation6], 256
    $region17: #{tpu_custom_call.1} parent=1 // pred_fallthru
      _
    %s56 = sadd.s32 0, 0
    %p57 = scmp.lt.s32.totalorder %s56, 0
    %s58 = scalar_select %p57, %s56, 0
    %s59 = smul.u32 2, %s58
    %s60 = sadd.s32 0, 0
    %p61 = scmp.lt.s32.totalorder %s60, 0
    %s62 = scalar_select %p61, %s60, 0
    %s63 = smul.u32 2, %s62
    %p64 = scmp.eq.s32.totalorder 0, 0
    // Predicated region
    $region18: #{tpu_custom_call.1} parent=1 // pred_check
      %p65 = pneg %p64
    $region19: #{tpu_custom_call.1} parent=1 // pred_check_branch
      %67 = sbr.rel (%p65) target = $region21
    $region20: #{tpu_custom_call.1} parent=1 // pred_region
      %68 = vst [vmem:[#allocation7] sm:$0xff] 0.0
      %69 = vst [vmem:[#allocation8] sm:$0xff] 0.0
      %70 = vst [vmem:[#allocation10] sm:$0xff] 0.0
    $region21: #{tpu_custom_call.1} parent=1 // pred_fallthru
      _
    %v71 = vld [vmem:[#allocation2] sm:$0xff]
    %v72 = vld [vmem:[#allocation2 + $0x8] sm:$0xff]
    %v73 = vld [vmem:[#allocation5] sm:$0xff]
    %v74 = vld [vmem:[#allocation5 + $0x8] sm:$0xff]
    %v75 = vmul.f32 %v71, 0.5
    %v76 = vmul.f32 %v72, 0.5
    %v77 = vtanh.pop %v75
    %v78 = vtanh.pop %v76
    %v79 = vmul.f32 %v77, 0.5
    %v80 = vmul.f32 %v78, 0.5
    %v81 = vadd.f32 %v79, 0.5
    %v82 = vadd.f32 %v80, 0.5
    %v83 = vld [vmem:[#allocation7] sm:$0xff]
    %v84 = vmul.f32 %v81, %v73
    %v85 = vmul.f32 %v82, %v74
    %v86 = vadd.f32 %v84, %v85
    %v87 = vadd.f32 %v83, %v86
    %88 = vst [vmem:[#allocation7] sm:$0xff] %v87
    %v89 = vld [vmem:[#allocation8] sm:$0xff]
    %v90 = vadd.f32 %v81, %v82
    %v91 = vadd.f32 %v89, %v90
    %92 = vst [vmem:[#allocation8] sm:$0xff] %v91
    %v93 = vld [vmem:[#allocation10] sm:$0xff]
    %v94 = vadd.f32 %v73, %v74
    %v95 = vadd.f32 %v93, %v94
    %96 = vst [vmem:[#allocation10] sm:$0xff] %v95
    // Predicated region
    $region22: #{tpu_custom_call.1} parent=1 // pred_check
      _
    $region23: #{tpu_custom_call.1} parent=1 // pred_check_branch
      %98 = sbr.rel (0) target = $region25
    $region24: #{tpu_custom_call.1} parent=1 // pred_region
      %s100 = ssub.s32 128, 128
      %101 = vsyncadd [#allocation4], %s100
      %s103 = sshll.u32 [#allocation7], 4
      %s104 = int_to_ptr.vmem [resolvable:$true] %s103
      %106 = dma.vmem_to_hbm [thread:$0]  %s104, 128, %s2, [#allocation4]
    $region25: #{tpu_custom_call.1} parent=1 // pred_fallthru
      _
    // Predicated region
    $region26: #{tpu_custom_call.1} parent=1 // pred_check
      _
    $region27: #{tpu_custom_call.1} parent=1 // pred_check_branch
      %108 = sbr.rel (0) target = $region29
    $region28: #{tpu_custom_call.1} parent=1 // pred_region
      %s110 = ssub.s32 128, 128
      %111 = vsyncadd [#allocation9], %s110
      %s113 = sshll.u32 [#allocation8], 4
      %s114 = int_to_ptr.vmem [resolvable:$true] %s113
      %116 = dma.vmem_to_hbm [thread:$0]  %s114, 128, %s3, [#allocation9]
    $region29: #{tpu_custom_call.1} parent=1 // pred_fallthru
      _
    // Predicated region
    $region30: #{tpu_custom_call.1} parent=1 // pred_check
      _
    $region31: #{tpu_custom_call.1} parent=1 // pred_check_branch
      %118 = sbr.rel (0) target = $region33
    $region32: #{tpu_custom_call.1} parent=1 // pred_region
      %s120 = ssub.s32 128, 128
      %121 = vsyncadd [#allocation9], %s120
      %s123 = sshll.u32 [#allocation10], 4
      %s124 = int_to_ptr.vmem [resolvable:$true] %s123
      %126 = dma.vmem_to_hbm [thread:$0]  %s124, 128, %s4, [#allocation9]
    $region33: #{tpu_custom_call.1} parent=1 // pred_fallthru
      _
    // Predicated region
    $region34: #{tpu_custom_call.1} parent=1 // pred_check
      _
    $region35: #{tpu_custom_call.1} parent=1 // pred_check_branch
      %128 = sbr.rel (0) target = $region37
    $region36: #{tpu_custom_call.1} parent=1 // pred_region
      %129 = dma.done [#allocation4], 128
    $region37: #{tpu_custom_call.1} parent=1 // pred_fallthru
      _
    // Predicated region
    $region38: #{tpu_custom_call.1} parent=1 // pred_check
      _
    $region39: #{tpu_custom_call.1} parent=1 // pred_check_branch
      %131 = sbr.rel (0) target = $region41
    $region40: #{tpu_custom_call.1} parent=1 // pred_region
      %132 = dma.done [#allocation9], 128
    $region41: #{tpu_custom_call.1} parent=1 // pred_fallthru
      _
    // Predicated region
    $region42: #{tpu_custom_call.1} parent=1 // pred_check
      _
    $region43: #{tpu_custom_call.1} parent=1 // pred_check_branch
      %134 = sbr.rel (0) target = $region45
    $region44: #{tpu_custom_call.1} parent=1 // pred_region
      %135 = dma.done [#allocation9], 128
    $region45: #{tpu_custom_call.1} parent=1 // pred_fallthru
      _
    %136 = vsyncpa [#allocation3], 1
    %137 = vsyncpa [#allocation6], 1
    %138 = vsyncpa [#allocation4], 1
    %139 = vsyncpa [#allocation9], 1

</llo_original>
